<compile_context>
chip_gen: v6e
topology: v6e:2x2x1
jax: 0.10.0
libtpu: 0.0.40
codegen_flags: <defaults>
</compile_context>

<pallas_src>
import jax
import jax.numpy as jnp
from jax.experimental import pallas as pl
from jax.experimental.pallas import tpu as pltpu

_NEG_INF = -1e30  # mask value for padded class lanes (exp underflows to 0)


def _round_up(x, m):
    return ((x + m - 1) // m) * m


def _vmem_limit_bytes():
    """Generation-aware scoped-VMEM limit (~3/4 of physical VMEM)."""
    phys = 64 * 1024 * 1024  # conservative default (v7x per-core VMEM)
    try:
        info = pltpu.get_tpu_info()
        phys = int(getattr(info, "vmem_capacity_bytes", phys)) or phys
    except Exception:
        pass
    return (phys * 3) // 4


def _choose_tiles(n, hw, c, nc_pad, x_itemsize, w_itemsize, out_itemsize, vmem_limit):
    """Pick (tn, hw_tile) so the double-buffered x & output slabs, the resident
    W/b and the pooled-sum accumulator fit under the scoped-VMEM limit, while
    keeping >= ~4 N grid steps when the batch allows it (DMA overlap + megacore).
    """
    c_lanes = _round_up(c, 128)
    resident = c_lanes * nc_pad * w_itemsize + nc_pad * 4  # W + b, resident
    headroom = 2 * 1024 * 1024
    budget = max(vmem_limit - resident - headroom, 1)

    def tile_bytes(tn, hw_t):
        tn8 = _round_up(max(tn, 1), 8)
        x_slab = 2 * tn * _round_up(hw_t, 8) * c_lanes * x_itemsize  # dbl-buffered
        out_slab = 2 * tn8 * nc_pad * out_itemsize                   # dbl-buffered
        acc = tn8 * c_lanes * 4                                      # f32 pooled sum
        return x_slab + out_slab + acc

    tn_min = n if n < 8 else 8

    if tile_bytes(tn_min, hw) <= budget:
        # Full-HW tile fits. Grow tn, but cap so the grid keeps >= ~4 N steps.
        if n <= 8:
            return n, hw
        cap = max(8, _round_up(pl.cdiv(n, 4), 8))
        per8 = tile_bytes(8, hw)                      # exact for tn multiples of 8
        fit = max(8, (budget // per8) * 8)
        return min(cap, fit), hw

    # x rows too big for the budget: split the spatial axis (reduction grid dim)
    # and accumulate the pooled sum in VMEM scratch.
    tn = tn_min
    hw_tile = hw
    while hw_tile > 8 and tile_bytes(tn, hw_tile) > budget:
        hw_tile = max(8, (hw_tile // 2 // 8) * 8)
    # TODO(synk): if even (tn_min, 8) does not fit (astronomically large C), a
    # channel split with a partial-matmul accumulator would be needed.
    return tn, hw_tile


def _make_kernel(hw_total, hw_tile):
    needs_mask = (hw_total % hw_tile) != 0

    def kernel(x_ref, w_ref, b_ref, o_ref, acc_ref):
        # x_ref: (tn, hw_tile, C) native dtype   w_ref: (C, NC_PAD) bf16 (1/HW folded)
        # b_ref: (1, NC_PAD) f32 (-1e30 pad)     o_ref: (tn, NC_PAD)
        # acc_ref: (tn, C) f32 pooled-sum accumulator (persists across hw steps)
        j = pl.program_id(1)

        @pl.when(j == 0)
        def _init():
            acc_ref[...] = jnp.zeros_like(acc_ref)

        x = x_ref[...].astype(jnp.float32)  # cast in-kernel; DMA stays narrow
        if needs_mask:
            # Zero rows past the true spatial extent (partial last HW tile).
            row = jax.lax.broadcasted_iota(jnp.int32, x.shape, 1) + j * hw_tile
            x = jnp.where(row < hw_total, x, 0.0)

        # Global average pool: sublane-axis sum; the 1/HW scale lives in W.
        acc_ref[...] += jnp.sum(x, axis=1)  # (tn, C) f32

        @pl.when(j == pl.num_programs(1) - 1)
        def _finish():
            pooled = acc_ref[...].astype(w_ref.dtype)  # bf16 -> single-pass MXU
            logits = (
                jnp.dot(pooled, w_ref[...], preferred_element_type=jnp.float32)
                + b_ref[...]
            )
            # Numerically stable softmax over classes (torch softmax dim=1).
            m = jnp.max(logits, axis=-1, keepdims=True)
            e = jnp.exp(logits - m)
            denom = jnp.sum(e, axis=-1, keepdims=True)
            # Exact divide: denom is only (tn, 1); rows sum to 1 to f32 rounding.
            o_ref[...] = (e / denom).astype(o_ref.dtype)

    return kernel


def last_layer_model(x_nchw, w, b, *, out_dtype=None):
    """Head of LastLayerModel: global-average-pool -> FC -> softmax.

    x_nchw: (N, C, H, W) backbone activations, in their native dtype (bf16/f32).
    w:      (C, NUM_CLASSES) FC weight.
    b:      (NUM_CLASSES,) FC bias.
    """
    n, c, h, wd = x_nchw.shape
    hw = h * wd
    num_classes = w.shape[1]
    out_dtype = out_dtype or x_nchw.dtype

    # Channels-last layout so C is the lane axis: GAP becomes a sublane reduce
    # and pooled (tn, C) is already MXU-ready.
    # TODO(synk): if the backbone can emit NHWC directly, feed it here and skip
    # this transpose (it costs one extra HBM pass over x).
    x3 = jnp.transpose(x_nchw, (0, 2, 3, 1)).reshape(n, hw, c)

    nc_pad = _round_up(num_classes, 128)

    # Fold the 1/(H*W) GAP scale into W (tiny, one-time) and ship it as bf16;
    # padded class lanes contribute 0 to the logits.
    w_p = jnp.zeros((c, nc_pad), dtype=jnp.float32)
    w_p = w_p.at[:, :num_classes].set(w.astype(jnp.float32) / float(hw))
    w_p = w_p.astype(jnp.bfloat16)
    # Padded bias lanes are -1e30 so their softmax weight is exactly 0.
    b_p = jnp.full((1, nc_pad), _NEG_INF, dtype=jnp.float32)
    b_p = b_p.at[0, :num_classes].set(b.astype(jnp.float32))

    vmem_limit = _vmem_limit_bytes()
    tn, hw_tile = _choose_tiles(
        n, hw, c, nc_pad,
        x_itemsize=x3.dtype.itemsize,
        w_itemsize=w_p.dtype.itemsize,
        out_itemsize=jnp.dtype(out_dtype).itemsize,
        vmem_limit=vmem_limit,
    )
    grid = (pl.cdiv(n, tn), pl.cdiv(hw, hw_tile))

    out_padded = pl.pallas_call(
        _make_kernel(hw, hw_tile),
        out_shape=jax.ShapeDtypeStruct((n, nc_pad), out_dtype),
        grid_spec=pltpu.PrefetchScalarGridSpec(
            num_scalar_prefetch=0,
            grid=grid,
            in_specs=[
                # x: tiled over (N, HW); double-buffered by Pallas (default).
                pl.BlockSpec((tn, hw_tile, c), lambda i, j: (i, j, 0)),
                # W, b: same block every step -> stay resident in VMEM.
                pl.BlockSpec((c, nc_pad), lambda i, j: (0, 0)),
                pl.BlockSpec((1, nc_pad), lambda i, j: (0, 0)),
            ],
            out_specs=pl.BlockSpec((tn, nc_pad), lambda i, j: (i, 0)),
            scratch_shapes=[pltpu.VMEM((tn, c), jnp.float32)],  # pooled-sum acc
        ),
        compiler_params=pltpu.CompilerParams(
            # N shards across TCs (v7x megacore); HW is the reduction axis.
            dimension_semantics=("parallel", "arbitrary"),
            vmem_limit_bytes=vmem_limit,
        ),
    )(x3, w_p, b_p)

    if nc_pad == num_classes:
        return out_padded
    return out_padded[:, :num_classes]


if __name__ == "__main__":
    # Small, deterministic shapes consistent with an image-classification head.
    N, C, H, W = 2, 4, 16, 16
    NUM_CLASSES = 16

    key = jax.random.PRNGKey(0)
    kx, kw, kb = jax.random.split(key, 3)
    x = jax.random.normal(kx, (N, C, H, W), dtype=jnp.float32)
    w = jax.random.normal(kw, (C, NUM_CLASSES), dtype=jnp.float32) * 0.1
    b = jax.random.normal(kb, (NUM_CLASSES,), dtype=jnp.float32) * 0.1

    out = last_layer_model(x, w, b)
    out = jax.block_until_ready(out)

    # Pure-JAX reference of the same forward pass (GAP -> FC -> softmax dim=1).
    pooled_ref = jnp.mean(x.reshape(N, C, H * W), axis=-1)
    logits_ref = pooled_ref @ w + b
    ref = jax.nn.softmax(logits_ref, axis=-1)

    assert out.shape == (N, NUM_CLASSES)
    # Tolerance covers the bf16 MXU matmul inside the kernel.
    assert jnp.allclose(out.astype(jnp.float32), ref, atol=5e-3, rtol=5e-3), \
        "mismatch vs reference"
    assert jnp.allclose(jnp.sum(out.astype(jnp.float32), axis=-1), 1.0, atol=1e-3)

    print("KERNEL_OK")
</pallas_src>

<mosaic_0001>
module attributes {stable_mosaic.version = 11 : i64} {
  func.func @kernel(%arg0: i32, %arg1: i32, %arg2: memref<2x256x4xf32, #tpu.memory_space<vmem>>, %arg3: memref<4x128xbf16, #tpu.memory_space<vmem>>, %arg4: memref<1x128xf32, #tpu.memory_space<vmem>>, %arg5: memref<2x128xf32, #tpu.memory_space<vmem>>, %arg6: memref<2x4xf32, #tpu.memory_space<vmem>>) attributes {dimension_semantics = [#tpu.dimension_semantics<parallel>, #tpu.dimension_semantics<arbitrary>], iteration_bounds = array<i64: 1, 1>, scalar_prefetch = 0 : i64, scratch_operands = 1 : i64, tpu.core_type = #tpu.core_type<tc>, window_params = [{transform_indices = @transform_0, window_bounds = array<i64: 2, 256, 4>}, {pipeline_mode = #tpu.pipeline_mode<synchronous>, transform_indices = @transform_1, window_bounds = array<i64: 4, 128>}, {pipeline_mode = #tpu.pipeline_mode<synchronous>, transform_indices = @transform_2, window_bounds = array<i64: 1, 128>}, {transform_indices = @transform_3, window_bounds = array<i64: 2, 128>}]} {
    %c0_i32 = arith.constant 0 : i32
    %0 = arith.cmpi eq, %arg1, %c0_i32 : i32
    %1 = arith.extui %0 : i1 to i32
    %c0_i32_0 = arith.constant 0 : i32
    %2 = arith.cmpi ne, %1, %c0_i32_0 : i32
    scf.if %2 {
      %cst_9 = arith.constant 0.000000e+00 : f32
      %11 = vector.broadcast %cst_9 : f32 to vector<2x4xf32>
      %c0_10 = arith.constant 0 : index
      %c0_11 = arith.constant 0 : index
      %12 = vector.load %arg6[%c0_10, %c0_11] : memref<2x4xf32, #tpu.memory_space<vmem>>, vector<2x4xf32>
      tpu.vector_store %arg6[%c0_10, %c0_11], %11 {strides = array<i32>} : memref<2x4xf32, #tpu.memory_space<vmem>>, vector<2x4xf32>,
    } else {
    }
    %c0 = arith.constant 0 : index
    %c0_1 = arith.constant 0 : index
    %c0_2 = arith.constant 0 : index
    %3 = vector.load %arg2[%c0, %c0_1, %c0_2] : memref<2x256x4xf32, #tpu.memory_space<vmem>>, vector<2x256x4xf32>
    %c0_3 = arith.constant 0 : index
    %c0_4 = arith.constant 0 : index
    %4 = vector.load %arg6[%c0_3, %c0_4] : memref<2x4xf32, #tpu.memory_space<vmem>>, vector<2x4xf32>
    %cst = arith.constant dense<0.000000e+00> : vector<2x4xf32>
    %5 = vector.multi_reduction <add>, %3, %cst [1] : vector<2x256x4xf32> to vector<2x4xf32>
    %6 = arith.addf %4, %5 : vector<2x4xf32>
    %c0_5 = arith.constant 0 : index
    %c0_6 = arith.constant 0 : index
    %7 = vector.load %arg6[%c0_5, %c0_6] : memref<2x4xf32, #tpu.memory_space<vmem>>, vector<2x4xf32>
    tpu.vector_store %arg6[%c0_5, %c0_6], %6 {strides = array<i32>} : memref<2x4xf32, #tpu.memory_space<vmem>>, vector<2x4xf32>,
    %c0_i32_7 = arith.constant 0 : i32
    %8 = arith.cmpi eq, %arg1, %c0_i32_7 : i32
    %9 = arith.extui %8 : i1 to i32
    %c0_i32_8 = arith.constant 0 : i32
    %10 = arith.cmpi ne, %9, %c0_i32_8 : i32
    scf.if %10 {
      %c0_9 = arith.constant 0 : index
      %c0_10 = arith.constant 0 : index
      %11 = vector.load %arg6[%c0_9, %c0_10] : memref<2x4xf32, #tpu.memory_space<vmem>>, vector<2x4xf32>
      %12 = arith.truncf %11 : vector<2x4xf32> to vector<2x4xbf16>
      %c0_11 = arith.constant 0 : index
      %c0_12 = arith.constant 0 : index
      %13 = vector.load %arg3[%c0_11, %c0_12] : memref<4x128xbf16, #tpu.memory_space<vmem>>, vector<4x128xbf16>
      %cst_13 = arith.constant dense<0.000000e+00> : vector<2x128xf32>
      %14 = tpu.matmul %12, %13, %cst_13 {dimension_numbers = #tpu.dot_dimension_numbers<[1], [0], [0], [1], [0, 0, 1, 1], [], []>} : vector<2x4xbf16>, vector<4x128xbf16>, vector<2x128xf32> -> vector<2x128xf32>
      %c0_14 = arith.constant 0 : index
      %c0_15 = arith.constant 0 : index
      %15 = vector.load %arg4[%c0_14, %c0_15] : memref<1x128xf32, #tpu.memory_space<vmem>>, vector<1x128xf32>
      %16 = vector.broadcast %15 : vector<1x128xf32> to vector<2x128xf32>
      %17 = arith.addf %14, %16 : vector<2x128xf32>
      %cst_16 = arith.constant dense<0xFF800000> : vector<2xf32>
      %18 = vector.multi_reduction <maximumf>, %17, %cst_16 [1] : vector<2x128xf32> to vector<2xf32>
      %19 = vector.shape_cast %18 : vector<2xf32> to vector<2x1xf32>
      %20 = vector.broadcast %19 : vector<2x1xf32> to vector<2x128xf32>
      %21 = arith.subf %17, %20 : vector<2x128xf32>
      %22 = math.exp %21 : vector<2x128xf32>
      %cst_17 = arith.constant dense<0.000000e+00> : vector<2xf32>
      %23 = vector.multi_reduction <add>, %22, %cst_17 [1] : vector<2x128xf32> to vector<2xf32>
      %24 = vector.shape_cast %23 : vector<2xf32> to vector<2x1xf32>
      %25 = vector.broadcast %24 : vector<2x1xf32> to vector<2x128xf32>
      %26 = arith.divf %22, %25 : vector<2x128xf32>
      %c0_18 = arith.constant 0 : index
      %c0_19 = arith.constant 0 : index
      %27 = vector.load %arg5[%c0_18, %c0_19] : memref<2x128xf32, #tpu.memory_space<vmem>>, vector<2x128xf32>
      tpu.vector_store %arg5[%c0_18, %c0_19], %26 {strides = array<i32>} : memref<2x128xf32, #tpu.memory_space<vmem>>, vector<2x128xf32>,
    } else {
    }
    return
  }
  func.func @transform_0(%arg0: i32, %arg1: i32) -> (i32, i32, i32) {
    %c0_i32 = arith.constant 0 : i32
    %c0_i32_0 = arith.constant 0 : i32
    return %arg0, %arg1, %c0_i32 : i32, i32, i32
  }
  func.func @transform_1(%arg0: i32, %arg1: i32) -> (i32, i32) {
    %c0_i32 = arith.constant 0 : i32
    %c0_i32_0 = arith.constant 0 : i32
    %c0_i32_1 = arith.constant 0 : i32
    return %c0_i32, %c0_i32_0 : i32, i32
  }
  func.func @transform_2(%arg0: i32, %arg1: i32) -> (i32, i32) {
    %c0_i32 = arith.constant 0 : i32
    %c0_i32_0 = arith.constant 0 : i32
    %c0_i32_1 = arith.constant 0 : i32
    return %c0_i32, %c0_i32_0 : i32, i32
  }
  func.func @transform_3(%arg0: i32, %arg1: i32) -> (i32, i32) {
    %c0_i32 = arith.constant 0 : i32
    %c0_i32_0 = arith.constant 0 : i32
    return %arg0, %c0_i32 : i32, i32
  }
}

</mosaic_0001>

<llo_original>
// kernel: tpu_custom_call.1
$region0: #{tpu_custom_call.1}
  #allocation0 [shape = 'u32[]', space=smem, size = 0x4, offset = 0x4, fixed_abs, tag = 'smem constant byte address 0x4 - core index']
  #allocation1 [shape = 'u32[144,128]{1,0:T(1,128)}', space=vmem, size = 0x12000, scoped, tag = 'internal scratch']
  #allocation2 [shape = 'f32[2,4]{1,0:T(2,128)}', space=vmem, size = 0x400, scoped, tag = 'scratch operand']
  %s0 = inlined_call_operand.vmem [shape: f32[2,256,4], index: 0, kind: input, shape index: {}]
  %s1 = inlined_call_operand.vmem [shape: bf16[4,128], index: 1, kind: input, shape index: {}]
  %s2 = inlined_call_operand.vmem [shape: f32[1,128], index: 2, kind: input, shape index: {}]
  %s3 = inlined_call_operand.hbm [shape: f32[2,128], index: 3, kind: output, shape index: {}]
  %s4 = sld [smem:[#allocation0]]
  $region30: #{tpu_custom_call.1} parent=0
    _
  %s6 = ssub.s32 1, %s4
  %s7 = scalar_select 0, %s6, %s4
  $region1: #{tpu_custom_call.1} parent=0
    #allocation3 [shape = 'u8[1024]{0}', space=vmem, size = 0x400, scoped, tag = 'output window, operand 0, single buffered']
    #allocation4 [shape = 's32[1]{0}', space=sflag, size = 0x4, scoped, tag = 'scoped memory for tpu_custom_call.1']
    %8 = vsyncpa [#allocation4], 0
    // Predicated region
    $region2: #{tpu_custom_call.1} parent=1 // pred_check
      _
    $region3: #{tpu_custom_call.1} parent=1 // pred_check_branch
      %10 = sbr.rel (0) target = $region5
    $region4: #{tpu_custom_call.1} parent=1 // pred_region
      _
    $region5: #{tpu_custom_call.1} parent=1 // pred_fallthru
      _
    // Predicated region
    $region6: #{tpu_custom_call.1} parent=1 // pred_check
      _
    $region7: #{tpu_custom_call.1} parent=1 // pred_check_branch
      %12 = sbr.rel (0) target = $region9
    $region8: #{tpu_custom_call.1} parent=1 // pred_region
      _
    $region9: #{tpu_custom_call.1} parent=1 // pred_fallthru
      _
    // Predicated region
    $region10: #{tpu_custom_call.1} parent=1 // pred_check
      _
    $region11: #{tpu_custom_call.1} parent=1 // pred_check_branch
      %14 = sbr.rel (0) target = $region13
    $region12: #{tpu_custom_call.1} parent=1 // pred_region
      _
    $region13: #{tpu_custom_call.1} parent=1 // pred_fallthru
      _
    %p16 = scmp.eq.s32.totalorder 0, 0
    // Predicated region
    $region14: #{tpu_custom_call.1} parent=1 // pred_check
      %p17 = pneg %p16
    $region15: #{tpu_custom_call.1} parent=1 // pred_check_branch
      %19 = sbr.rel (%p17) target = $region17
    $region16: #{tpu_custom_call.1} parent=1 // pred_region
      %vm20 = vcmask 25600
      %21 = vst.msk [vmem:[#allocation2] sm:$0x3] %vm20, 0.0
    $region17: #{tpu_custom_call.1} parent=1 // pred_fallthru
      _
    %v22 = vld [vmem:[%s0] sm:$0xff]
    %v23 = vld [vmem:[%s0 + $0x8] sm:$0xff]
    %v24 = vld [vmem:[%s0 + $0x10] sm:$0xff]
    %v25 = vld [vmem:[%s0 + $0x18] sm:$0xff]
    %v26 = vld [vmem:[%s0 + $0x20] sm:$0xff]
    %v27 = vld [vmem:[%s0 + $0x28] sm:$0xff]
    %v28 = vld [vmem:[%s0 + $0x30] sm:$0xff]
    %v29 = vld [vmem:[%s0 + $0x38] sm:$0xff]
    %v30 = vld [vmem:[%s0 + $0x40] sm:$0xff]
    %v31 = vld [vmem:[%s0 + $0x48] sm:$0xff]
    %v32 = vld [vmem:[%s0 + $0x50] sm:$0xff]
    %v33 = vld [vmem:[%s0 + $0x58] sm:$0xff]
    %v34 = vld [vmem:[%s0 + $0x60] sm:$0xff]
    %v35 = vld [vmem:[%s0 + $0x68] sm:$0xff]
    %v36 = vld [vmem:[%s0 + $0x70] sm:$0xff]
    %v37 = vld [vmem:[%s0 + $0x78] sm:$0xff]
    %v38 = vld [vmem:[%s0 + $0x80] sm:$0xff]
    %v39 = vld [vmem:[%s0 + $0x88] sm:$0xff]
    %v40 = vld [vmem:[%s0 + $0x90] sm:$0xff]
    %v41 = vld [vmem:[%s0 + $0x98] sm:$0xff]
    %v42 = vld [vmem:[%s0 + $0xa0] sm:$0xff]
    %v43 = vld [vmem:[%s0 + $0xa8] sm:$0xff]
    %v44 = vld [vmem:[%s0 + $0xb0] sm:$0xff]
    %v45 = vld [vmem:[%s0 + $0xb8] sm:$0xff]
    %v46 = vld [vmem:[%s0 + $0xc0] sm:$0xff]
    %v47 = vld [vmem:[%s0 + $0xc8] sm:$0xff]
    %v48 = vld [vmem:[%s0 + $0xd0] sm:$0xff]
    %v49 = vld [vmem:[%s0 + $0xd8] sm:$0xff]
    %v50 = vld [vmem:[%s0 + $0xe0] sm:$0xff]
    %v51 = vld [vmem:[%s0 + $0xe8] sm:$0xff]
    %v52 = vld [vmem:[%s0 + $0xf0] sm:$0xff]
    %v53 = vld [vmem:[%s0 + $0xf8] sm:$0xff]
    %v54 = vld [vmem:[%s0 + $0x100] sm:$0xff]
    %v55 = vld [vmem:[%s0 + $0x108] sm:$0xff]
    %v56 = vld [vmem:[%s0 + $0x110] sm:$0xff]
    %v57 = vld [vmem:[%s0 + $0x118] sm:$0xff]
    %v58 = vld [vmem:[%s0 + $0x120] sm:$0xff]
    %v59 = vld [vmem:[%s0 + $0x128] sm:$0xff]
    %v60 = vld [vmem:[%s0 + $0x130] sm:$0xff]
    %v61 = vld [vmem:[%s0 + $0x138] sm:$0xff]
    %v62 = vld [vmem:[%s0 + $0x140] sm:$0xff]
    %v63 = vld [vmem:[%s0 + $0x148] sm:$0xff]
    %v64 = vld [vmem:[%s0 + $0x150] sm:$0xff]
    %v65 = vld [vmem:[%s0 + $0x158] sm:$0xff]
    %v66 = vld [vmem:[%s0 + $0x160] sm:$0xff]
    %v67 = vld [vmem:[%s0 + $0x168] sm:$0xff]
    %v68 = vld [vmem:[%s0 + $0x170] sm:$0xff]
    %v69 = vld [vmem:[%s0 + $0x178] sm:$0xff]
    %v70 = vld [vmem:[%s0 + $0x180] sm:$0xff]
    %v71 = vld [vmem:[%s0 + $0x188] sm:$0xff]
    %v72 = vld [vmem:[%s0 + $0x190] sm:$0xff]
    %v73 = vld [vmem:[%s0 + $0x198] sm:$0xff]
    %v74 = vld [vmem:[%s0 + $0x1a0] sm:$0xff]
    %v75 = vld [vmem:[%s0 + $0x1a8] sm:$0xff]
    %v76 = vld [vmem:[%s0 + $0x1b0] sm:$0xff]
    %v77 = vld [vmem:[%s0 + $0x1b8] sm:$0xff]
    %v78 = vld [vmem:[%s0 + $0x1c0] sm:$0xff]
    %v79 = vld [vmem:[%s0 + $0x1c8] sm:$0xff]
    %v80 = vld [vmem:[%s0 + $0x1d0] sm:$0xff]
    %v81 = vld [vmem:[%s0 + $0x1d8] sm:$0xff]
    %v82 = vld [vmem:[%s0 + $0x1e0] sm:$0xff]
    %v83 = vld [vmem:[%s0 + $0x1e8] sm:$0xff]
    %v84 = vld [vmem:[%s0 + $0x1f0] sm:$0xff]
    %v85 = vld [vmem:[%s0 + $0x1f8] sm:$0xff]
    %v86 = vld [vmem:[#allocation2] sm:$0x3]
    %vm87 = vcmask 31744
    %v88 = vsel %vm87, %v22, 0.0
    %v89 = vsel %vm87, %v23, 0.0
    %v90 = vadd.f32 %v88, %v89
    %v91 = vsel %vm87, %v24, 0.0
    %v92 = vadd.f32 %v90, %v91
    %v93 = vsel %vm87, %v25, 0.0
    %v94 = vadd.f32 %v92, %v93
    %v95 = vsel %vm87, %v26, 0.0
    %v96 = vadd.f32 %v94, %v95
    %v97 = vsel %vm87, %v27, 0.0
    %v98 = vadd.f32 %v96, %v97
    %v99 = vsel %vm87, %v28, 0.0
    %v100 = vadd.f32 %v98, %v99
    %v101 = vsel %vm87, %v29, 0.0
    %v102 = vadd.f32 %v100, %v101
    %v103 = vsel %vm87, %v30, 0.0
    %v104 = vadd.f32 %v102, %v103
    %v105 = vsel %vm87, %v31, 0.0
    %v106 = vadd.f32 %v104, %v105
    %v107 = vsel %vm87, %v32, 0.0
    %v108 = vadd.f32 %v106, %v107
    %v109 = vsel %vm87, %v33, 0.0
    %v110 = vadd.f32 %v108, %v109
    %v111 = vsel %vm87, %v34, 0.0
    %v112 = vadd.f32 %v110, %v111
    %v113 = vsel %vm87, %v35, 0.0
    %v114 = vadd.f32 %v112, %v113
    %v115 = vsel %vm87, %v36, 0.0
    %v116 = vadd.f32 %v114, %v115
    %v117 = vsel %vm87, %v37, 0.0
    %v118 = vadd.f32 %v116, %v117
    %v119 = vsel %vm87, %v38, 0.0
    %v120 = vadd.f32 %v118, %v119
    %v121 = vsel %vm87, %v39, 0.0
    %v122 = vadd.f32 %v120, %v121
    %v123 = vsel %vm87, %v40, 0.0
    %v124 = vadd.f32 %v122, %v123
    %v125 = vsel %vm87, %v41, 0.0
    %v126 = vadd.f32 %v124, %v125
    %v127 = vsel %vm87, %v42, 0.0
    %v128 = vadd.f32 %v126, %v127
    %v129 = vsel %vm87, %v43, 0.0
    %v130 = vadd.f32 %v128, %v129
    %v131 = vsel %vm87, %v44, 0.0
    %v132 = vadd.f32 %v130, %v131
    %v133 = vsel %vm87, %v45, 0.0
    %v134 = vadd.f32 %v132, %v133
    %v135 = vsel %vm87, %v46, 0.0
    %v136 = vadd.f32 %v134, %v135
    %v137 = vsel %vm87, %v47, 0.0
    %v138 = vadd.f32 %v136, %v137
    %v139 = vsel %vm87, %v48, 0.0
    %v140 = vadd.f32 %v138, %v139
    %v141 = vsel %vm87, %v49, 0.0
    %v142 = vadd.f32 %v140, %v141
    %v143 = vsel %vm87, %v50, 0.0
    %v144 = vadd.f32 %v142, %v143
    %v145 = vsel %vm87, %v51, 0.0
    %v146 = vadd.f32 %v144, %v145
    %v147 = vsel %vm87, %v52, 0.0
    %v148 = vadd.f32 %v146, %v147
    %v149 = vsel %vm87, %v53, 0.0
    %v150 = vadd.f32 %v148, %v149
    %v151 = vrot.slane %v150, 4
    %v152 = vadd.f32 %v150, %v151
    %v153 = vrot.slane %v152, 2
    %v154 = vadd.f32 %v152, %v153
    %v155 = vrot.slane %v154, 1
    %v156 = vadd.f32 %v154, %v155
    %v157 = vsel %vm87, %v54, 0.0
    %v158 = vsel %vm87, %v55, 0.0
    %v159 = vadd.f32 %v157, %v158
    %v160 = vsel %vm87, %v56, 0.0
    %v161 = vadd.f32 %v159, %v160
    %v162 = vsel %vm87, %v57, 0.0
    %v163 = vadd.f32 %v161, %v162
    %v164 = vsel %vm87, %v58, 0.0
    %v165 = vadd.f32 %v163, %v164
    %v166 = vsel %vm87, %v59, 0.0
    %v167 = vadd.f32 %v165, %v166
    %v168 = vsel %vm87, %v60, 0.0
    %v169 = vadd.f32 %v167, %v168
    %v170 = vsel %vm87, %v61, 0.0
    %v171 = vadd.f32 %v169, %v170
    %v172 = vsel %vm87, %v62, 0.0
    %v173 = vadd.f32 %v171, %v172
    %v174 = vsel %vm87, %v63, 0.0
    %v175 = vadd.f32 %v173, %v174
    %v176 = vsel %vm87, %v64, 0.0
    %v177 = vadd.f32 %v175, %v176
    %v178 = vsel %vm87, %v65, 0.0
    %v179 = vadd.f32 %v177, %v178
    %v180 = vsel %vm87, %v66, 0.0
    %v181 = vadd.f32 %v179, %v180
    %v182 = vsel %vm87, %v67, 0.0
    %v183 = vadd.f32 %v181, %v182
    %v184 = vsel %vm87, %v68, 0.0
    %v185 = vadd.f32 %v183, %v184
    %v186 = vsel %vm87, %v69, 0.0
    %v187 = vadd.f32 %v185, %v186
    %v188 = vsel %vm87, %v70, 0.0
    %v189 = vadd.f32 %v187, %v188
    %v190 = vsel %vm87, %v71, 0.0
    %v191 = vadd.f32 %v189, %v190
    %v192 = vsel %vm87, %v72, 0.0
    %v193 = vadd.f32 %v191, %v192
    %v194 = vsel %vm87, %v73, 0.0
    %v195 = vadd.f32 %v193, %v194
    %v196 = vsel %vm87, %v74, 0.0
    %v197 = vadd.f32 %v195, %v196
    %v198 = vsel %vm87, %v75, 0.0
    %v199 = vadd.f32 %v197, %v198
    %v200 = vsel %vm87, %v76, 0.0
    %v201 = vadd.f32 %v199, %v200
    %v202 = vsel %vm87, %v77, 0.0
    %v203 = vadd.f32 %v201, %v202
    %v204 = vsel %vm87, %v78, 0.0
    %v205 = vadd.f32 %v203, %v204
    %v206 = vsel %vm87, %v79, 0.0
    %v207 = vadd.f32 %v205, %v206
    %v208 = vsel %vm87, %v80, 0.0
    %v209 = vadd.f32 %v207, %v208
    %v210 = vsel %vm87, %v81, 0.0
    %v211 = vadd.f32 %v209, %v210
    %v212 = vsel %vm87, %v82, 0.0
    %v213 = vadd.f32 %v211, %v212
    %v214 = vsel %vm87, %v83, 0.0
    %v215 = vadd.f32 %v213, %v214
    %v216 = vsel %vm87, %v84, 0.0
    %v217 = vadd.f32 %v215, %v216
    %v218 = vsel %vm87, %v85, 0.0
    %v219 = vadd.f32 %v217, %v218
    %v220 = vrot.slane %v219, 4
    %v221 = vadd.f32 %v219, %v220
    %v222 = vrot.slane %v221, 2
    %v223 = vadd.f32 %v221, %v222
    %v224 = vrot.slane %v223, 1
    %v225 = vadd.f32 %v223, %v224
    %vm228 = vcmask 1041409
    %v229 = vsel %vm228, %v225, %v156
    %v231 = vadd.f32 %v86, %v229
    %vm232 = vcmask 25600
    %233 = vst.msk [vmem:[#allocation2] sm:$0x3] %vm232, %v231
    // Predicated region
    $region18: #{tpu_custom_call.1} parent=1 // pred_check
      %p234 = pneg %p16
    $region19: #{tpu_custom_call.1} parent=1 // pred_check_branch
      %236 = sbr.rel (%p234) target = $region21
    $region20: #{tpu_custom_call.1} parent=1 // pred_region
      %v237 = vld [vmem:[#allocation2] sm:$0x3]
      %v238 = vpack.c.bf16 %v237, %v237
      %v239 = vld [vmem:[%s1] sm:$0x3]
      %v240 = vld [vmem:[%s2] sm:$0x1]
      %v242 = vlaneseq
      %v243 = vshrl.u32 %v242, 7
      %v244 = vsub.s32 0, %v243
      %v245 = vrot.slane %v240, %v244
      %v248 = vsel %vm87, %v238, 0
      %vm250 = vcmask 1041408
      %v252 = vsel %vm250, %v239, 0
      %254 = vmatprep.subr.bf16.mxu0 0
      %255 = vmatpush1.bf16.msra.mxu0 0
      %256 = vmatprep.subr.bf16.mxu0 0
      %257 = vmatpush1.bf16.msra.mxu0 0
      %258 = vmatprep.subr.bf16.mxu0 0
      %259 = vmatpush1.bf16.msra.mxu0 0
      %260 = vmatprep.subr.bf16.mxu0 0
      %261 = vmatpush1.bf16.msra.mxu0 0
      %262 = vmatprep.subr.bf16.mxu0 0
      %263 = vmatpush1.bf16.msra.mxu0 0
      %264 = vmatprep.subr.bf16.mxu0 0
      %265 = vmatpush1.bf16.msra.mxu0 0
      %266 = vmatprep.subr.bf16.mxu0 0
      %267 = vmatpush1.bf16.msra.mxu0 0
      %268 = vmatprep.subr.bf16.mxu0 0
      %269 = vmatpush1.bf16.msra.mxu0 %v252
      %270 = vmatprep.subr.bf16.mxu0 0
      %271 = vmatpush2.bf16.msra.mxu0 0
      %272 = vmatprep.subr.bf16.mxu0 0
      %273 = vmatpush2.bf16.msra.mxu0 0
      %274 = vmatprep.subr.bf16.mxu0 0
      %275 = vmatpush2.bf16.msra.mxu0 0
      %276 = vmatprep.subr.bf16.mxu0 0
      %277 = vmatpush2.bf16.msra.mxu0 0
      %278 = vmatprep.subr.bf16.mxu0 0
      %279 = vmatpush2.bf16.msra.mxu0 0
      %280 = vmatprep.subr.bf16.mxu0 0
      %281 = vmatpush2.bf16.msra.mxu0 0
      %282 = vmatprep.subr.bf16.mxu0 0
      %283 = vmatpush2.bf16.msra.mxu0 0
      %284 = vmatprep.subr.bf16.mxu0 0
      %285 = vmatpush2.bf16.msra.mxu0 0
      %286 = vmatprep.mubr.bf16.mxu0 0
      %287 = vmatmul.mubr.bf16.gmra.mxu0 %v248
      %v288 = vpop.f32.mrf.mxu0
      %v289 = vadd.f32 %v245, %v288
      %v290 = vpop.f32.mrf.mxu0
      %v291 = vpop.f32.mrf.mxu0
      %v292 = vpop.f32.mrf.mxu0
      %293 = vdwg.mxu0
      %v294 = vsel %vm250, %v289, -inf
      %295 = vmax.xlane.f32.xlu0 %v294
      %v296 = vpop.xlane.xlu0 %295
      %v297 = vsub.f32 %v289, %v296
      %v298 = vmul.f32 %v297, 1.442695
      %v299 = vpow.pop %v298
      %v300 = vsel %vm250, %v299, 0.0
      %301 = vadd.xlane.f32.xlu0 %v300
      %v302 = vpop.xlane.xlu0 %301
      %v303 = vrcp.pop %v302
      %v304 = vmul.f32 %v299, %v303
      %305 = vst [vmem:[#allocation3] sm:$0x3] %v304
    $region21: #{tpu_custom_call.1} parent=1 // pred_fallthru
      _
    // Predicated region
    $region22: #{tpu_custom_call.1} parent=1 // pred_check
      _
    $region23: #{tpu_custom_call.1} parent=1 // pred_check_branch
      %307 = sbr.rel (0) target = $region25
    $region24: #{tpu_custom_call.1} parent=1 // pred_region
      %s309 = ssub.s32 32, 32
      %310 = vsyncadd [#allocation4], %s309
      %s312 = sshll.u32 [#allocation3], 4
      %s313 = int_to_ptr.vmem [resolvable:$true] %s312
      %315 = dma.vmem_to_hbm [thread:$0]  %s313, 32, %s3, [#allocation4]
    $region25: #{tpu_custom_call.1} parent=1 // pred_fallthru
      _
    // Predicated region
    $region26: #{tpu_custom_call.1} parent=1 // pred_check
      _
    $region27: #{tpu_custom_call.1} parent=1 // pred_check_branch
      %317 = sbr.rel (0) target = $region29
    $region28: #{tpu_custom_call.1} parent=1 // pred_region
      %318 = dma.done [#allocation4], 32
    $region29: #{tpu_custom_call.1} parent=1 // pred_fallthru
      _
    %319 = vsyncpa [#allocation4], 1

</llo_original>
